<compile_context>
chip_gen: v6e
topology: v6e:2x2x1
jax: 0.10.0
libtpu: 0.0.40
codegen_flags: <defaults>
</compile_context>

<pallas_src>
import functools

import jax
import jax.numpy as jnp
import numpy as np
from jax import lax
from jax.experimental import pallas as pl
from jax.experimental.pallas import tpu as pltpu


def _fdd_kernel(x_ref, t_ref, inter_ref, psum_ref, tsum_ref, fault_ref, *,
                num_classes, pixels, tile_pixels, total_pixel_tiles, ragged,
                approx):
    """Grid = (batch, pixel_supertile, pixel_tile).

    Outputs are per-(sample, supertile) partial sums that stay resident in VMEM
    across the innermost ("arbitrary") pixel-tile axis.
    Kernel views (leading grid dims squeezed):
      x_ref:    (C+1, TP)  logits + aux row
      t_ref:    (C,   TP)  one-hot targets
      inter/psum/tsum_ref: (C, 1)   fault_ref: (1, 1)
    """
    C = num_classes
    p = pl.program_id(2)

    @pl.when(p == 0)
    def _():
        inter_ref[...] = jnp.zeros_like(inter_ref)
        psum_ref[...] = jnp.zeros_like(psum_ref)
        tsum_ref[...] = jnp.zeros_like(tsum_ref)
        fault_ref[...] = jnp.zeros_like(fault_ref)

    x = x_ref[...].astype(jnp.float32)        # (C+1, TP)
    tgt = t_ref[...].astype(jnp.float32)      # (C,   TP)
    seg = x[:C, :]                            # (C, TP)
    aux = x[C:, :]                            # (1, TP)

    # ---- numerically-stable softmax over the class (sublane) axis ----
    # Only 3 cross-sublane reductions total (max, sum, correctness sum); the
    # explicit pred/target argmaxes of v1 are gone (keeps the 2-XLU budget of
    # v6e/v7x off the critical path at large tiles).
    m = jnp.max(seg, axis=0, keepdims=True)                     # (1, TP)  XLU #1
    e = jnp.exp(seg - m)                                        # (C, TP)  EUP
    denom = jnp.sum(e, axis=0, keepdims=True)                   # (1, TP)  XLU #2
    probs = e * pl.reciprocal(denom, approx=approx)             # (C, TP)

    # ---- fault term: wrong = 1 - <target class attains the logit max> ----
    # Exploits one-hot targets + softmax monotonicity; differs from
    # torch.argmax's first-occurrence tie-break only on exact logit ties.
    correct = jnp.sum(tgt * (seg == m).astype(jnp.float32),
                      axis=0, keepdims=True)                    # (1, TP)  XLU #3
    unc = jax.nn.sigmoid(aux)                                   # (1, TP)
    fault_elem = jnp.abs((1.0 - correct) - unc)                 # (1, TP)

    def accumulate(pr, tg, fe):
        # Lane reductions (one cross-lane XLU op per tile, amortised over TP).
        inter_ref[...] += jnp.sum(pr * tg, axis=-1, keepdims=True)   # (C, 1)
        psum_ref[...] += jnp.sum(pr, axis=-1, keepdims=True)         # (C, 1)
        tsum_ref[...] += jnp.sum(tg, axis=-1, keepdims=True)         # (C, 1)
        fault_ref[...] += jnp.sum(fe, axis=-1, keepdims=True)        # (1, 1)

    if ragged:
        # Only the globally-last pixel tile overhangs the image; pay the mask
        # (iota + 3 selects over garbage OOB lanes) only there.
        is_last = jnp.logical_and(pl.program_id(1) == pl.num_programs(1) - 1,
                                  p == pl.num_programs(2) - 1)

        @pl.when(is_last)
        def _():
            valid_lanes = pixels - (total_pixel_tiles - 1) * tile_pixels
            lane = lax.broadcasted_iota(jnp.int32, (1, tile_pixels), 1)
            valid = lane < valid_lanes
            # Mask probs, tgt AND fault_elem: OOB lanes contain unspecified
            # (possibly NaN/Inf) data straight from the DMA.
            accumulate(jnp.where(valid, probs, 0.0),
                       jnp.where(valid, tgt, 0.0),
                       jnp.where(valid, fault_elem, 0.0))

        @pl.when(jnp.logical_not(is_last))
        def _():
            accumulate(probs, tgt, fault_elem)
    else:
        accumulate(probs, tgt, fault_elem)


def fault_detector_dice_loss(outputs, targets, *, alpha=1.0, lamda=1.0,
                             smooth=1.0, max_pixels_per_tile=None,
                             approx_reciprocal=False, pixel_supertiles=None):
    """Pallas implementation of FaultDetectorDiceLoss(alpha, lamda).forward.

    outputs: (N, C+1, H, W) -- C segmentation logit channels + 1 aux channel.
    targets: (N, C,   H, W) -- one-hot targets (any float/int dtype; upcast
                               to f32 inside the kernel).
    """
    del lamda  # unused by the reference forward pass
    N, Cp1, H, W = outputs.shape
    C = Cp1 - 1
    P = H * W

    # Free, contiguous reshapes only (no transpose, no slice, no upcast).
    x = outputs.reshape(N, Cp1, P)
    t = targets.reshape(N, C, P)

    # ---- pixel tile: aim for >= ~4 MiB of input DMA per grid step ----
    bytes_per_pixel = (Cp1 * jnp.dtype(outputs.dtype).itemsize
                       + C * jnp.dtype(targets.dtype).itemsize)
    if max_pixels_per_tile is None:
        max_pixels_per_tile = int(min(131072,
                                      max(8192, (4 << 20) // bytes_per_pixel)))
    if P <= max_pixels_per_tile:
        tp = P                                              # single lane-dense tile
    else:
        tp = max(128, (max_pixels_per_tile // 128) * 128)   # lane-aligned tile
    n_pt_total = pl.cdiv(P, tp)
    ragged = (P % tp) != 0

    # ---- pixel super-tiles: keep both v7x TensorCores busy at small/odd N ----
    if pixel_supertiles is None:
        pixel_supertiles = 2 if (N % 2 == 1 and n_pt_total % 2 == 0) else 1
    if pixel_supertiles < 1 or n_pt_total % pixel_supertiles != 0:
        pixel_supertiles = 1
    n_super = pixel_supertiles
    pt_per_super = n_pt_total // n_super

    kernel = functools.partial(
        _fdd_kernel, num_classes=C, pixels=P, tile_pixels=tp,
        total_pixel_tiles=n_pt_total, ragged=ragged, approx=approx_reciprocal)

    # ---- VMEM limit from the real working set, capped below physical ----
    x_block_bytes = Cp1 * tp * jnp.dtype(outputs.dtype).itemsize
    t_block_bytes = C * tp * jnp.dtype(targets.dtype).itemsize
    # 2 pipeline buffers per input block + ~8 (C, tp) f32 temporaries
    # (cast/exp/probs/masks) + 2 MiB slack for Mosaic internal scratch.
    working_set = 2 * (x_block_bytes + t_block_bytes) + 8 * C * tp * 4 + (2 << 20)
    vmem_limit = int(min(48 << 20, max(32 << 20, working_set)))

    def pix_map(n, s, p):
        return (n, 0, s * pt_per_super + p)

    out_shape = (
        jax.ShapeDtypeStruct((N, n_super, C, 1), jnp.float32),  # sum(probs*tgt)
        jax.ShapeDtypeStruct((N, n_super, C, 1), jnp.float32),  # sum(probs)
        jax.ShapeDtypeStruct((N, n_super, C, 1), jnp.float32),  # sum(tgt)
        jax.ShapeDtypeStruct((N, n_super, 1, 1), jnp.float32),  # sum |wrong-unc|
    )
    out_specs = (
        pl.BlockSpec((None, None, C, 1), lambda n, s, p: (n, s, 0, 0)),
        pl.BlockSpec((None, None, C, 1), lambda n, s, p: (n, s, 0, 0)),
        pl.BlockSpec((None, None, C, 1), lambda n, s, p: (n, s, 0, 0)),
        pl.BlockSpec((None, None, 1, 1), lambda n, s, p: (n, s, 0, 0)),
    )

    inter, psum, tsum, fault = pl.pallas_call(
        kernel,
        out_shape=out_shape,
        grid_spec=pltpu.PrefetchScalarGridSpec(
            num_scalar_prefetch=0,
            grid=(N, n_super, pt_per_super),
            in_specs=[
                pl.BlockSpec((None, Cp1, tp), pix_map),   # logits + aux row
                pl.BlockSpec((None, C, tp), pix_map),     # one-hot targets
            ],
            out_specs=out_specs,
        ),
        compiler_params=pltpu.CompilerParams(
            dimension_semantics=("parallel", "parallel", "arbitrary"),
            vmem_limit_bytes=vmem_limit,
        ),
    )(x, t)

    # Tiny (N * n_super * C) finalize in plain JAX so both grid axes stay parallel.
    inter = jnp.sum(inter, axis=1)[..., 0]   # (N, C)
    psum = jnp.sum(psum, axis=1)[..., 0]     # (N, C)
    tsum = jnp.sum(tsum, axis=1)[..., 0]     # (N, C)
    dice = (2.0 * inter + smooth) / (psum + tsum + smooth)
    dice_loss = 1.0 - jnp.mean(dice)
    fault_mean = jnp.sum(fault) / jnp.float32(N * P)
    return dice_loss + jnp.float32(alpha) * fault_mean


def _reference_loss(outputs, targets, *, alpha=1.0, smooth=1.0):
    """Pure-JAX transcription of the PyTorch forward pass (for verification)."""
    seg = jnp.swapaxes(outputs[:, :-1], 1, -1).astype(jnp.float32)   # (N, W, H, C)
    aux = jnp.swapaxes(outputs[:, -1:], 1, -1).astype(jnp.float32)   # (N, W, H, 1)
    tgt = jnp.swapaxes(targets, 1, -1).astype(jnp.float32)           # (N, W, H, C)

    probs = jax.nn.softmax(seg, axis=-1)
    inter = jnp.sum(probs * tgt, axis=(1, 2))
    dice = (2.0 * inter + smooth) / (jnp.sum(probs, axis=(1, 2))
                                     + jnp.sum(tgt, axis=(1, 2)) + smooth)
    dice_loss = 1.0 - jnp.mean(dice)

    pred = jnp.argmax(probs, axis=-1).reshape(-1)
    dtgt = jnp.argmax(tgt, axis=-1).reshape(-1)
    wrong = (pred != dtgt).astype(jnp.float32)
    unc = jax.nn.sigmoid(aux).reshape(-1)
    fault = jnp.mean(jnp.abs(wrong - unc))
    return dice_loss + alpha * fault


if __name__ == "__main__":
    N, C, H, W = 2, 4, 16, 16
    key = jax.random.PRNGKey(0)
    k1, k2, k3, k4 = jax.random.split(key, 4)

    # outputs: C segmentation channels + 1 aux channel (NCHW); one-hot targets.
    outputs = jax.random.normal(k1, (N, C + 1, H, W), dtype=jnp.float32)
    labels = jax.random.randint(k2, (N, H, W), 0, C)
    targets = jnp.transpose(jax.nn.one_hot(labels, C, dtype=jnp.float32),
                            (0, 3, 1, 2))
    ref = _reference_loss(outputs, targets, alpha=1.0)

    # 1) default: exact reciprocal, whole image in one lane-dense pixel tile
    loss = fault_detector_dice_loss(outputs, targets, alpha=1.0, lamda=1.0)
    loss = jax.block_until_ready(loss)
    np.testing.assert_allclose(np.asarray(loss), np.asarray(ref),
                               rtol=1e-5, atol=1e-6)

    # 2) multiple pixel tiles (exercises cross-tile accumulation)
    loss = fault_detector_dice_loss(outputs, targets, alpha=1.0, lamda=1.0,
                                    max_pixels_per_tile=128)
    loss = jax.block_until_ready(loss)
    np.testing.assert_allclose(np.asarray(loss), np.asarray(ref),
                               rtol=1e-5, atol=1e-6)

    # 3) approx reciprocal fast path (EUP vrcp)
    loss = fault_detector_dice_loss(outputs, targets, alpha=1.0, lamda=1.0,
                                    approx_reciprocal=True)
    loss = jax.block_until_ready(loss)
    np.testing.assert_allclose(np.asarray(loss), np.asarray(ref),
                               rtol=2e-3, atol=2e-3)

    # 4) ragged pixel tiling, N even (no super-tiles)
    H2 = W2 = 20
    outputs2 = jax.random.normal(k3, (N, C + 1, H2, W2), dtype=jnp.float32)
    labels2 = jax.random.randint(k4, (N, H2, W2), 0, C)
    targets2 = jnp.transpose(jax.nn.one_hot(labels2, C, dtype=jnp.float32),
                             (0, 3, 1, 2))
    ref2 = _reference_loss(outputs2, targets2, alpha=1.0)
    loss2 = fault_detector_dice_loss(outputs2, targets2, alpha=1.0, lamda=1.0,
                                     max_pixels_per_tile=128)
    loss2 = jax.block_until_ready(loss2)
    np.testing.assert_allclose(np.asarray(loss2), np.asarray(ref2),
                               rtol=1e-5, atol=1e-6)

    # 5) N == 1 with ragged tiles: auto pixel super-tiles (v7x dual-core path)
    outputs3 = outputs2[:1]
    targets3 = targets2[:1]
    ref3 = _reference_loss(outputs3, targets3, alpha=1.0)
    loss3 = fault_detector_dice_loss(outputs3, targets3, alpha=1.0, lamda=1.0,
                                     max_pixels_per_tile=128)
    loss3 = jax.block_until_ready(loss3)
    np.testing.assert_allclose(np.asarray(loss3), np.asarray(ref3),
                               rtol=1e-5, atol=1e-6)

    # 6) narrow-dtype inputs (bf16 logits + bf16 one-hot targets): half the
    #    HBM traffic; the f32 upcast happens inside the kernel.
    outputs_b = outputs.astype(jnp.bfloat16)
    targets_b = targets.astype(jnp.bfloat16)
    ref_b = _reference_loss(outputs_b, targets_b, alpha=1.0)
    loss_b = fault_detector_dice_loss(outputs_b, targets_b, alpha=1.0, lamda=1.0)
    loss_b = jax.block_until_ready(loss_b)
    np.testing.assert_allclose(np.asarray(loss_b), np.asarray(ref_b),
                               rtol=1e-5, atol=1e-5)

    print("KERNEL_OK")
</pallas_src>

<mosaic_0001>
module attributes {stable_mosaic.version = 11 : i64} {
  func.func @_fdd_kernel(%arg0: i32, %arg1: i32, %arg2: i32, %arg3: memref<1x5x256xf32, #tpu.memory_space<vmem>>, %arg4: memref<1x4x256xf32, #tpu.memory_space<vmem>>, %arg5: memref<1x1x4x1xf32, #tpu.memory_space<vmem>>, %arg6: memref<1x1x4x1xf32, #tpu.memory_space<vmem>>, %arg7: memref<1x1x4x1xf32, #tpu.memory_space<vmem>>, %arg8: memref<1x1x1x1xf32, #tpu.memory_space<vmem>>) attributes {dimension_semantics = [#tpu.dimension_semantics<parallel>, #tpu.dimension_semantics<parallel>, #tpu.dimension_semantics<arbitrary>], iteration_bounds = array<i64: 2, 1, 1>, scalar_prefetch = 0 : i64, scratch_operands = 0 : i64, tpu.core_type = #tpu.core_type<tc>, window_params = [{transform_indices = @transform_0, window_bounds = array<i64: 1, 5, 256>}, {transform_indices = @transform_1, window_bounds = array<i64: 1, 4, 256>}, {transform_indices = @transform_2, window_bounds = array<i64: 1, 1, 4, 1>}, {transform_indices = @transform_3, window_bounds = array<i64: 1, 1, 4, 1>}, {transform_indices = @transform_4, window_bounds = array<i64: 1, 1, 4, 1>}, {transform_indices = @transform_5, window_bounds = array<i64: 1, 1, 1, 1>}]} {
    %c0_i32 = arith.constant 0 : i32
    %0 = arith.cmpi eq, %arg2, %c0_i32 : i32
    %1 = arith.extui %0 : i1 to i32
    %c0_i32_0 = arith.constant 0 : i32
    %2 = arith.cmpi ne, %1, %c0_i32_0 : i32
    scf.if %2 {
      %cst_46 = arith.constant 0.000000e+00 : f32
      %68 = vector.broadcast %cst_46 : f32 to vector<4x1xf32>
      %c0_47 = arith.constant 0 : index
      %c0_48 = arith.constant 0 : index
      %c0_49 = arith.constant 0 : index
      %c0_50 = arith.constant 0 : index
      %69 = vector.load %arg5[%c0_47, %c0_48, %c0_49, %c0_50] : memref<1x1x4x1xf32, #tpu.memory_space<vmem>>, vector<1x1x4x1xf32>
      %70 = vector.shape_cast %69 : vector<1x1x4x1xf32> to vector<4x1xf32>
      %71 = vector.shape_cast %68 : vector<4x1xf32> to vector<1x1x4x1xf32>
      tpu.vector_store %arg5[%c0_47, %c0_48, %c0_49, %c0_50], %71 {strides = array<i32>} : memref<1x1x4x1xf32, #tpu.memory_space<vmem>>, vector<1x1x4x1xf32>,
      %cst_51 = arith.constant 0.000000e+00 : f32
      %72 = vector.broadcast %cst_51 : f32 to vector<4x1xf32>
      %c0_52 = arith.constant 0 : index
      %c0_53 = arith.constant 0 : index
      %c0_54 = arith.constant 0 : index
      %c0_55 = arith.constant 0 : index
      %73 = vector.load %arg6[%c0_52, %c0_53, %c0_54, %c0_55] : memref<1x1x4x1xf32, #tpu.memory_space<vmem>>, vector<1x1x4x1xf32>
      %74 = vector.shape_cast %73 : vector<1x1x4x1xf32> to vector<4x1xf32>
      %75 = vector.shape_cast %72 : vector<4x1xf32> to vector<1x1x4x1xf32>
      tpu.vector_store %arg6[%c0_52, %c0_53, %c0_54, %c0_55], %75 {strides = array<i32>} : memref<1x1x4x1xf32, #tpu.memory_space<vmem>>, vector<1x1x4x1xf32>,
      %cst_56 = arith.constant 0.000000e+00 : f32
      %76 = vector.broadcast %cst_56 : f32 to vector<4x1xf32>
      %c0_57 = arith.constant 0 : index
      %c0_58 = arith.constant 0 : index
      %c0_59 = arith.constant 0 : index
      %c0_60 = arith.constant 0 : index
      %77 = vector.load %arg7[%c0_57, %c0_58, %c0_59, %c0_60] : memref<1x1x4x1xf32, #tpu.memory_space<vmem>>, vector<1x1x4x1xf32>
      %78 = vector.shape_cast %77 : vector<1x1x4x1xf32> to vector<4x1xf32>
      %79 = vector.shape_cast %76 : vector<4x1xf32> to vector<1x1x4x1xf32>
      tpu.vector_store %arg7[%c0_57, %c0_58, %c0_59, %c0_60], %79 {strides = array<i32>} : memref<1x1x4x1xf32, #tpu.memory_space<vmem>>, vector<1x1x4x1xf32>,
      %cst_61 = arith.constant 0.000000e+00 : f32
      %80 = vector.broadcast %cst_61 : f32 to vector<1x1xf32>
      %c0_62 = arith.constant 0 : index
      %c0_63 = arith.constant 0 : index
      %c0_64 = arith.constant 0 : index
      %c0_65 = arith.constant 0 : index
      %81 = vector.load %arg8[%c0_62, %c0_63, %c0_64, %c0_65] : memref<1x1x1x1xf32, #tpu.memory_space<vmem>>, vector<1x1x1x1xf32>
      %82 = vector.shape_cast %81 : vector<1x1x1x1xf32> to vector<1x1xf32>
      %83 = vector.shape_cast %80 : vector<1x1xf32> to vector<1x1x1x1xf32>
      tpu.vector_store %arg8[%c0_62, %c0_63, %c0_64, %c0_65], %83 {strides = array<i32>} : memref<1x1x1x1xf32, #tpu.memory_space<vmem>>, vector<1x1x1x1xf32>,
    } else {
    }
    %c0 = arith.constant 0 : index
    %c0_1 = arith.constant 0 : index
    %c0_2 = arith.constant 0 : index
    %3 = vector.load %arg3[%c0, %c0_1, %c0_2] : memref<1x5x256xf32, #tpu.memory_space<vmem>>, vector<1x5x256xf32>
    %4 = vector.shape_cast %3 : vector<1x5x256xf32> to vector<5x256xf32>
    %c0_3 = arith.constant 0 : index
    %c0_4 = arith.constant 0 : index
    %c0_5 = arith.constant 0 : index
    %5 = vector.load %arg4[%c0_3, %c0_4, %c0_5] : memref<1x4x256xf32, #tpu.memory_space<vmem>>, vector<1x4x256xf32>
    %6 = vector.shape_cast %5 : vector<1x4x256xf32> to vector<4x256xf32>
    %7 = vector.extract_strided_slice %4 {offsets = [0, 0], sizes = [4, 256], strides = [1, 1]} : vector<5x256xf32> to vector<4x256xf32>
    %8 = vector.extract_strided_slice %4 {offsets = [4, 0], sizes = [1, 256], strides = [1, 1]} : vector<5x256xf32> to vector<1x256xf32>
    %cst = arith.constant dense<0xFF800000> : vector<256xf32>
    %9 = vector.multi_reduction <maximumf>, %7, %cst [0] : vector<4x256xf32> to vector<256xf32>
    %10 = vector.shape_cast %9 : vector<256xf32> to vector<1x256xf32>
    %11 = vector.broadcast %10 : vector<1x256xf32> to vector<4x256xf32>
    %12 = arith.subf %7, %11 : vector<4x256xf32>
    %13 = math.exp %12 : vector<4x256xf32>
    %cst_6 = arith.constant dense<0.000000e+00> : vector<256xf32>
    %14 = vector.multi_reduction <add>, %13, %cst_6 [0] : vector<4x256xf32> to vector<256xf32>
    %15 = vector.shape_cast %14 : vector<256xf32> to vector<1x256xf32>
    %16 = tpu.reciprocal %15 : vector<1x256xf32> -> vector<1x256xf32>
    %17 = vector.broadcast %16 : vector<1x256xf32> to vector<4x256xf32>
    %18 = arith.mulf %13, %17 : vector<4x256xf32>
    %19 = vector.broadcast %10 : vector<1x256xf32> to vector<4x256xf32>
    %20 = arith.cmpf oeq, %7, %19 : vector<4x256xf32>
    %21 = arith.extui %20 : vector<4x256xi1> to vector<4x256xi32>
    %22 = arith.sitofp %21 : vector<4x256xi32> to vector<4x256xf32>
    %23 = arith.mulf %6, %22 : vector<4x256xf32>
    %cst_7 = arith.constant dense<0.000000e+00> : vector<256xf32>
    %24 = vector.multi_reduction <add>, %23, %cst_7 [0] : vector<4x256xf32> to vector<256xf32>
    %25 = vector.shape_cast %24 : vector<256xf32> to vector<1x256xf32>
    %26 = arith.negf %8 : vector<1x256xf32>
    %27 = math.exp %26 : vector<1x256xf32>
    %cst_8 = arith.constant 1.000000e+00 : f32
    %28 = vector.broadcast %cst_8 : f32 to vector<1x256xf32>
    %29 = arith.addf %28, %27 : vector<1x256xf32>
    %30 = arith.divf %28, %29 : vector<1x256xf32>
    %cst_9 = arith.constant 1.000000e+00 : f32
    %31 = vector.broadcast %cst_9 : f32 to vector<1x256xf32>
    %32 = arith.subf %31, %25 : vector<1x256xf32>
    %33 = arith.subf %32, %30 : vector<1x256xf32>
    %34 = math.absf %33 : vector<1x256xf32>
    %c0_10 = arith.constant 0 : index
    %c0_11 = arith.constant 0 : index
    %c0_12 = arith.constant 0 : index
    %c0_13 = arith.constant 0 : index
    %35 = vector.load %arg5[%c0_10, %c0_11, %c0_12, %c0_13] : memref<1x1x4x1xf32, #tpu.memory_space<vmem>>, vector<1x1x4x1xf32>
    %36 = vector.shape_cast %35 : vector<1x1x4x1xf32> to vector<4x1xf32>
    %37 = arith.mulf %18, %6 : vector<4x256xf32>
    %cst_14 = arith.constant dense<0.000000e+00> : vector<4xf32>
    %38 = vector.multi_reduction <add>, %37, %cst_14 [1] : vector<4x256xf32> to vector<4xf32>
    %39 = vector.shape_cast %38 : vector<4xf32> to vector<4x1xf32>
    %40 = arith.addf %36, %39 : vector<4x1xf32>
    %c0_15 = arith.constant 0 : index
    %c0_16 = arith.constant 0 : index
    %c0_17 = arith.constant 0 : index
    %c0_18 = arith.constant 0 : index
    %41 = vector.load %arg5[%c0_15, %c0_16, %c0_17, %c0_18] : memref<1x1x4x1xf32, #tpu.memory_space<vmem>>, vector<1x1x4x1xf32>
    %42 = vector.shape_cast %41 : vector<1x1x4x1xf32> to vector<4x1xf32>
    %43 = vector.shape_cast %40 : vector<4x1xf32> to vector<1x1x4x1xf32>
    tpu.vector_store %arg5[%c0_15, %c0_16, %c0_17, %c0_18], %43 {strides = array<i32>} : memref<1x1x4x1xf32, #tpu.memory_space<vmem>>, vector<1x1x4x1xf32>,
    %c0_19 = arith.constant 0 : index
    %c0_20 = arith.constant 0 : index
    %c0_21 = arith.constant 0 : index
    %c0_22 = arith.constant 0 : index
    %44 = vector.load %arg6[%c0_19, %c0_20, %c0_21, %c0_22] : memref<1x1x4x1xf32, #tpu.memory_space<vmem>>, vector<1x1x4x1xf32>
    %45 = vector.shape_cast %44 : vector<1x1x4x1xf32> to vector<4x1xf32>
    %cst_23 = arith.constant dense<0.000000e+00> : vector<4xf32>
    %46 = vector.multi_reduction <add>, %18, %cst_23 [1] : vector<4x256xf32> to vector<4xf32>
    %47 = vector.shape_cast %46 : vector<4xf32> to vector<4x1xf32>
    %48 = arith.addf %45, %47 : vector<4x1xf32>
    %c0_24 = arith.constant 0 : index
    %c0_25 = arith.constant 0 : index
    %c0_26 = arith.constant 0 : index
    %c0_27 = arith.constant 0 : index
    %49 = vector.load %arg6[%c0_24, %c0_25, %c0_26, %c0_27] : memref<1x1x4x1xf32, #tpu.memory_space<vmem>>, vector<1x1x4x1xf32>
    %50 = vector.shape_cast %49 : vector<1x1x4x1xf32> to vector<4x1xf32>
    %51 = vector.shape_cast %48 : vector<4x1xf32> to vector<1x1x4x1xf32>
    tpu.vector_store %arg6[%c0_24, %c0_25, %c0_26, %c0_27], %51 {strides = array<i32>} : memref<1x1x4x1xf32, #tpu.memory_space<vmem>>, vector<1x1x4x1xf32>,
    %c0_28 = arith.constant 0 : index
    %c0_29 = arith.constant 0 : index
    %c0_30 = arith.constant 0 : index
    %c0_31 = arith.constant 0 : index
    %52 = vector.load %arg7[%c0_28, %c0_29, %c0_30, %c0_31] : memref<1x1x4x1xf32, #tpu.memory_space<vmem>>, vector<1x1x4x1xf32>
    %53 = vector.shape_cast %52 : vector<1x1x4x1xf32> to vector<4x1xf32>
    %cst_32 = arith.constant dense<0.000000e+00> : vector<4xf32>
    %54 = vector.multi_reduction <add>, %6, %cst_32 [1] : vector<4x256xf32> to vector<4xf32>
    %55 = vector.shape_cast %54 : vector<4xf32> to vector<4x1xf32>
    %56 = arith.addf %53, %55 : vector<4x1xf32>
    %c0_33 = arith.constant 0 : index
    %c0_34 = arith.constant 0 : index
    %c0_35 = arith.constant 0 : index
    %c0_36 = arith.constant 0 : index
    %57 = vector.load %arg7[%c0_33, %c0_34, %c0_35, %c0_36] : memref<1x1x4x1xf32, #tpu.memory_space<vmem>>, vector<1x1x4x1xf32>
    %58 = vector.shape_cast %57 : vector<1x1x4x1xf32> to vector<4x1xf32>
    %59 = vector.shape_cast %56 : vector<4x1xf32> to vector<1x1x4x1xf32>
    tpu.vector_store %arg7[%c0_33, %c0_34, %c0_35, %c0_36], %59 {strides = array<i32>} : memref<1x1x4x1xf32, #tpu.memory_space<vmem>>, vector<1x1x4x1xf32>,
    %c0_37 = arith.constant 0 : index
    %c0_38 = arith.constant 0 : index
    %c0_39 = arith.constant 0 : index
    %c0_40 = arith.constant 0 : index
    %60 = vector.load %arg8[%c0_37, %c0_38, %c0_39, %c0_40] : memref<1x1x1x1xf32, #tpu.memory_space<vmem>>, vector<1x1x1x1xf32>
    %61 = vector.shape_cast %60 : vector<1x1x1x1xf32> to vector<1x1xf32>
    %cst_41 = arith.constant dense<0.000000e+00> : vector<1xf32>
    %62 = vector.multi_reduction <add>, %34, %cst_41 [1] : vector<1x256xf32> to vector<1xf32>
    %63 = vector.shape_cast %62 : vector<1xf32> to vector<1x1xf32>
    %64 = arith.addf %61, %63 : vector<1x1xf32>
    %c0_42 = arith.constant 0 : index
    %c0_43 = arith.constant 0 : index
    %c0_44 = arith.constant 0 : index
    %c0_45 = arith.constant 0 : index
    %65 = vector.load %arg8[%c0_42, %c0_43, %c0_44, %c0_45] : memref<1x1x1x1xf32, #tpu.memory_space<vmem>>, vector<1x1x1x1xf32>
    %66 = vector.shape_cast %65 : vector<1x1x1x1xf32> to vector<1x1xf32>
    %67 = vector.shape_cast %64 : vector<1x1xf32> to vector<1x1x1x1xf32>
    tpu.vector_store %arg8[%c0_42, %c0_43, %c0_44, %c0_45], %67 {strides = array<i32>} : memref<1x1x1x1xf32, #tpu.memory_space<vmem>>, vector<1x1x1x1xf32>,
    return
  }
  func.func @transform_0(%arg0: i32, %arg1: i32, %arg2: i32) -> (i32, i32, i32) {
    %c1_i32 = arith.constant 1 : i32
    %0 = arith.muli %arg1, %c1_i32 : i32
    %1 = arith.addi %0, %arg2 : i32
    %c0_i32 = arith.constant 0 : i32
    %c0_i32_0 = arith.constant 0 : i32
    return %arg0, %c0_i32, %1 : i32, i32, i32
  }
  func.func @transform_1(%arg0: i32, %arg1: i32, %arg2: i32) -> (i32, i32, i32) {
    %c1_i32 = arith.constant 1 : i32
    %0 = arith.muli %arg1, %c1_i32 : i32
    %1 = arith.addi %0, %arg2 : i32
    %c0_i32 = arith.constant 0 : i32
    %c0_i32_0 = arith.constant 0 : i32
    return %arg0, %c0_i32, %1 : i32, i32, i32
  }
  func.func @transform_2(%arg0: i32, %arg1: i32, %arg2: i32) -> (i32, i32, i32, i32) {
    %c0_i32 = arith.constant 0 : i32
    %c0_i32_0 = arith.constant 0 : i32
    %c0_i32_1 = arith.constant 0 : i32
    return %arg0, %arg1, %c0_i32, %c0_i32_0 : i32, i32, i32, i32
  }
  func.func @transform_3(%arg0: i32, %arg1: i32, %arg2: i32) -> (i32, i32, i32, i32) {
    %c0_i32 = arith.constant 0 : i32
    %c0_i32_0 = arith.constant 0 : i32
    %c0_i32_1 = arith.constant 0 : i32
    return %arg0, %arg1, %c0_i32, %c0_i32_0 : i32, i32, i32, i32
  }
  func.func @transform_4(%arg0: i32, %arg1: i32, %arg2: i32) -> (i32, i32, i32, i32) {
    %c0_i32 = arith.constant 0 : i32
    %c0_i32_0 = arith.constant 0 : i32
    %c0_i32_1 = arith.constant 0 : i32
    return %arg0, %arg1, %c0_i32, %c0_i32_0 : i32, i32, i32, i32
  }
  func.func @transform_5(%arg0: i32, %arg1: i32, %arg2: i32) -> (i32, i32, i32, i32) {
    %c0_i32 = arith.constant 0 : i32
    %c0_i32_0 = arith.constant 0 : i32
    %c0_i32_1 = arith.constant 0 : i32
    return %arg0, %arg1, %c0_i32, %c0_i32_0 : i32, i32, i32, i32
  }
}

</mosaic_0001>

<llo_original>
// kernel: tpu_custom_call.1
$region0: #{tpu_custom_call.1}
  #allocation0 [shape = 'u32[]', space=smem, size = 0x4, offset = 0x4, fixed_abs, tag = 'smem constant byte address 0x4 - core index']
  #allocation1 [shape = 'u32[144,128]{1,0:T(1,128)}', space=vmem, size = 0x12000, scoped, tag = 'internal scratch']
  %s0 = inlined_call_operand.vmem [shape: f32[2,5,256], index: 0, kind: input, shape index: {}]
  %s1 = inlined_call_operand.vmem [shape: f32[2,4,256], index: 1, kind: input, shape index: {}]
  %s2 = inlined_call_operand.vmem [shape: f32[2,1,4,1], index: 2, kind: output, shape index: {0}]
  %s3 = inlined_call_operand.vmem [shape: f32[2,1,4,1], index: 3, kind: output, shape index: {1}]
  %s4 = inlined_call_operand.vmem [shape: f32[2,1,4,1], index: 4, kind: output, shape index: {2}]
  %s5 = inlined_call_operand.vmem [shape: f32[2,1,1,1], index: 5, kind: output, shape index: {3}]
  %6 = xla_tuple %s2, %s3, %s4, %s5
  %s7 = sld [smem:[#allocation0]]
  $region69: #{tpu_custom_call.1} parent=0
    _
  %s9 = ssub.s32 1, %s7
  %s10 = scalar_select 0, %s9, %s7
  loop: start=0, step=1, limit=4
  $region2: #{tpu_custom_call.1} parent=0 // loop_pre_header
    _
  $region3: #{tpu_custom_call.1} parent=0 // loop_header
    %s12 = sphi 0, %s16
    %p13 = scmp.ge.s32.totalorder %s12, 4
    %s19 = sphi 0, %s38
    %s20 = sphi 0, %s34
    %s21 = sphi 0, %s30
    %s22 = sphi 0, %s19
    %s23 = sphi 0, %s20
    %s24 = sphi 0, %s21
    %s25 = sphi 0, %s22
    %s26 = sphi 0, %s23
    %s27 = sphi 0, %s24
    %s45 = sphi 0, %s47
    %s48 = sphi 0, %s45
    %s49 = sphi 0, %s48
    %s65 = sphi 0, %s49
    %s75 = sphi 0, %s77
    %s78 = sphi 0, %s75
    %s79 = sphi 0, %s78
    %s95 = sphi 0, %s79
    %s103 = sphi 0, %s105
    %s106 = sphi 0, %s103
    %s107 = sphi 0, %s106
    %s123 = sphi 0, %s107
    %s131 = sphi 0, %s133
    %s134 = sphi 0, %s131
    %s135 = sphi 0, %s134
    %s151 = sphi 0, %s135
    %s159 = sphi 0, %s161
    %s162 = sphi 0, %s159
    %s163 = sphi 0, %s162
    %s179 = sphi 0, %s163
    %s187 = sphi 0, %s189
    %s190 = sphi 0, %s187
    %s191 = sphi 0, %s190
    %s207 = sphi 0, %s191
  $region4: #{tpu_custom_call.1} parent=0 // loop_header_branch
    %15 = sbr.rel (%p13) target = $region8
  $region5: #{tpu_custom_call.1} parent=0 // loop_body
    %s17 = ssub.s32 %s12, 1
    %s18 = ssub.s32 %s12, 2
    %s28 = sadd.s32 1, %s21
    %p29 = scmp.ge.s32.totalorder %s28, 1
    %s30 = scalar_select %p29, 0, %s28
    %s31 = sadd.s32 1, %s20
    %s32 = scalar_select %p29, %s31, %s20
    %p33 = scmp.ge.s32.totalorder %s32, 1
    %s34 = scalar_select %p33, 0, %s32
    %s35 = sadd.s32 1, %s19
    %s36 = scalar_select %p33, %s35, %s19
    %p37 = scmp.ge.s32.totalorder %s36, 2
    %s38 = scalar_select %p37, 0, %s36
    %s39 = sadd.s32 %s20, %s21
    %s40 = sadd.s32 %s34, %s30
    %s41 = ssub.s32 %s19, %s38
    %s42 = ssub.s32 %s39, %s40
    %s43 = sor.u32 %s41, %s42
    %p44 = scmp.eq.s32.totalorder %s43, 0
    %s46 = sadd.s32 %s45, 1
    %s47 = scalar_select %p44, %s45, %s46
    %p50 = pneg %p44
    %p51 = scmp.eq.s32.totalorder %s12, 1
    %p52 = por %p50, %p51
    %p53 = scmp.ne.s32.totalorder %s45, %s48
    %p54 = scmp.eq.s32.totalorder %s12, 0
    %p55 = por %p53, %p54
    %p56 = scmp.ne.s32.totalorder %s45, %s48
    %p57 = scmp.eq.s32.totalorder %s17, 1
    %p58 = por %p56, %p57
    %p59 = scmp.ne.s32.totalorder %s48, %s49
    %p60 = scmp.eq.s32.totalorder %s17, 0
    %p61 = por %p59, %p60
    %p62 = scmp.ne.s32.totalorder %s48, %s49
    %p63 = scmp.eq.s32.totalorder %s18, 1
    %p64 = por %p62, %p63
    %p66 = scmp.ne.s32.totalorder %s49, %s65
    %p67 = scmp.eq.s32.totalorder %s18, 0
    %p68 = por %p66, %p67
    %s69 = sadd.s32 %s20, %s21
    %s70 = sadd.s32 %s34, %s30
    %s71 = ssub.s32 %s19, %s38
    %s72 = ssub.s32 %s69, %s70
    %s73 = sor.u32 %s71, %s72
    %p74 = scmp.eq.s32.totalorder %s73, 0
    %s76 = sadd.s32 %s75, 1
    %s77 = scalar_select %p74, %s75, %s76
    %p80 = pneg %p74
    %p81 = scmp.eq.s32.totalorder %s12, 1
    %p82 = por %p80, %p81
    %p83 = scmp.ne.s32.totalorder %s75, %s78
    %p84 = scmp.eq.s32.totalorder %s12, 0
    %p85 = por %p83, %p84
    %p86 = scmp.ne.s32.totalorder %s75, %s78
    %p87 = scmp.eq.s32.totalorder %s17, 1
    %p88 = por %p86, %p87
    %p89 = scmp.ne.s32.totalorder %s78, %s79
    %p90 = scmp.eq.s32.totalorder %s17, 0
    %p91 = por %p89, %p90
    %p92 = scmp.ne.s32.totalorder %s78, %s79
    %p93 = scmp.eq.s32.totalorder %s18, 1
    %p94 = por %p92, %p93
    %p96 = scmp.ne.s32.totalorder %s79, %s95
    %p97 = scmp.eq.s32.totalorder %s18, 0
    %p98 = por %p96, %p97
    %s99 = ssub.s32 %s19, %s38
    %s100 = ssub.s32 %s20, %s34
    %s101 = sor.u32 %s99, %s100
    %p102 = scmp.eq.s32.totalorder %s101, 0
    %s104 = sadd.s32 %s103, 1
    %s105 = scalar_select %p102, %s103, %s104
    %p108 = pneg %p102
    %p109 = scmp.eq.s32.totalorder %s12, 1
    %p110 = por %p108, %p109
    %p111 = scmp.ne.s32.totalorder %s103, %s106
    %p112 = scmp.eq.s32.totalorder %s12, 0
    %p113 = por %p111, %p112
    %p114 = scmp.ne.s32.totalorder %s103, %s106
    %p115 = scmp.eq.s32.totalorder %s17, 1
    %p116 = por %p114, %p115
    %p117 = scmp.ne.s32.totalorder %s106, %s107
    %p118 = scmp.eq.s32.totalorder %s17, 0
    %p119 = por %p117, %p118
    %p120 = scmp.ne.s32.totalorder %s106, %s107
    %p121 = scmp.eq.s32.totalorder %s18, 1
    %p122 = por %p120, %p121
    %p124 = scmp.ne.s32.totalorder %s107, %s123
    %p125 = scmp.eq.s32.totalorder %s18, 0
    %p126 = por %p124, %p125
    %s127 = ssub.s32 %s19, %s38
    %s128 = ssub.s32 %s20, %s34
    %s129 = sor.u32 %s127, %s128
    %p130 = scmp.eq.s32.totalorder %s129, 0
    %s132 = sadd.s32 %s131, 1
    %s133 = scalar_select %p130, %s131, %s132
    %p136 = pneg %p130
    %p137 = scmp.eq.s32.totalorder %s12, 1
    %p138 = por %p136, %p137
    %p139 = scmp.ne.s32.totalorder %s131, %s134
    %p140 = scmp.eq.s32.totalorder %s12, 0
    %p141 = por %p139, %p140
    %p142 = scmp.ne.s32.totalorder %s131, %s134
    %p143 = scmp.eq.s32.totalorder %s17, 1
    %p144 = por %p142, %p143
    %p145 = scmp.ne.s32.totalorder %s134, %s135
    %p146 = scmp.eq.s32.totalorder %s17, 0
    %p147 = por %p145, %p146
    %p148 = scmp.ne.s32.totalorder %s134, %s135
    %p149 = scmp.eq.s32.totalorder %s18, 1
    %p150 = por %p148, %p149
    %p152 = scmp.ne.s32.totalorder %s135, %s151
    %p153 = scmp.eq.s32.totalorder %s18, 0
    %p154 = por %p152, %p153
    %s155 = ssub.s32 %s19, %s38
    %s156 = ssub.s32 %s20, %s34
    %s157 = sor.u32 %s155, %s156
    %p158 = scmp.eq.s32.totalorder %s157, 0
    %s160 = sadd.s32 %s159, 1
    %s161 = scalar_select %p158, %s159, %s160
    %p164 = pneg %p158
    %p165 = scmp.eq.s32.totalorder %s12, 1
    %p166 = por %p164, %p165
    %p167 = scmp.ne.s32.totalorder %s159, %s162
    %p168 = scmp.eq.s32.totalorder %s12, 0
    %p169 = por %p167, %p168
    %p170 = scmp.ne.s32.totalorder %s159, %s162
    %p171 = scmp.eq.s32.totalorder %s17, 1
    %p172 = por %p170, %p171
    %p173 = scmp.ne.s32.totalorder %s162, %s163
    %p174 = scmp.eq.s32.totalorder %s17, 0
    %p175 = por %p173, %p174
    %p176 = scmp.ne.s32.totalorder %s162, %s163
    %p177 = scmp.eq.s32.totalorder %s18, 1
    %p178 = por %p176, %p177
    %p180 = scmp.ne.s32.totalorder %s163, %s179
    %p181 = scmp.eq.s32.totalorder %s18, 0
    %p182 = por %p180, %p181
    %s183 = ssub.s32 %s19, %s38
    %s184 = ssub.s32 %s20, %s34
    %s185 = sor.u32 %s183, %s184
    %p186 = scmp.eq.s32.totalorder %s185, 0
    %s188 = sadd.s32 %s187, 1
    %s189 = scalar_select %p186, %s187, %s188
    %p192 = pneg %p186
    %p193 = scmp.eq.s32.totalorder %s12, 1
    %p194 = por %p192, %p193
    %p195 = scmp.ne.s32.totalorder %s187, %s190
    %p196 = scmp.eq.s32.totalorder %s12, 0
    %p197 = por %p195, %p196
    %p198 = scmp.ne.s32.totalorder %s187, %s190
    %p199 = scmp.eq.s32.totalorder %s17, 1
    %p200 = por %p198, %p199
    %p201 = scmp.ne.s32.totalorder %s190, %s191
    %p202 = scmp.eq.s32.totalorder %s17, 0
    %p203 = por %p201, %p202
    %p204 = scmp.ne.s32.totalorder %s190, %s191
    %p205 = scmp.eq.s32.totalorder %s18, 1
    %p206 = por %p204, %p205
    %p208 = scmp.ne.s32.totalorder %s191, %s207
    %p209 = scmp.eq.s32.totalorder %s18, 0
    %p210 = por %p208, %p209
    %p211 = scmp.le.s32.totalorder 1, %s12
    %p212 = scmp.lt.s32.totalorder %s12, 3
    %p213 = pnand %p211, %p212
    %p214 = pneg %p213
    // Predicated region
    $region9: #{tpu_custom_call.1} parent=5 // pred_check
      _
    $region10: #{tpu_custom_call.1} parent=5 // pred_check_branch
      %216 = sbr.rel (%p213) target = $region12
    $region11: #{tpu_custom_call.1} parent=5 // pred_region
      %s217 = ssub.s32 %s12, 1
    $region12: #{tpu_custom_call.1} parent=5 // pred_fallthru
      _
    %p218 = scmp.lt.s32.totalorder %s12, 2
    // Predicated region
    $region13: #{tpu_custom_call.1} parent=5 // pred_check
      %p219 = pneg %p218
    $region14: #{tpu_custom_call.1} parent=5 // pred_check_branch
      %221 = sbr.rel (%p219) target = $region16
    $region15: #{tpu_custom_call.1} parent=5 // pred_region
      // Predicated region
      $region17: #{tpu_custom_call.1} parent=15 // pred_check
        %p222 = pneg %p55
      $region18: #{tpu_custom_call.1} parent=15 // pred_check_branch
        %224 = sbr.rel (%p222) target = $region20
      $region19: #{tpu_custom_call.1} parent=15 // pred_region
        %s225 = sadd.s32 %s20, %s21
        %s226 = smul.u32 2, %s225
        %p227 = scmp.lt.s32.totalorder %s19, 1
        %s228 = scalar_select %p227, %s19, 1
        %p229 = scmp.lt.s32.totalorder %s226, 1
        %s230 = scalar_select %p229, %s226, 1
        %s231 = smul.addr %s228, 2
        %s232 = sadd.s32 %s230, %s231
        %s233 = smul.addr %s232, 8
        %s234 = scalar_lea.vmem %s0, %s233
        %s235 = sadd.s32 %s20, %s21
        %s236 = smul.u32 2, %s235
      $region20: #{tpu_custom_call.1} parent=15 // pred_fallthru
        _
      // Predicated region
      $region21: #{tpu_custom_call.1} parent=15 // pred_check
        %p237 = pneg %p85
      $region22: #{tpu_custom_call.1} parent=15 // pred_check_branch
        %239 = sbr.rel (%p237) target = $region24
      $region23: #{tpu_custom_call.1} parent=15 // pred_region
        %s240 = sadd.s32 %s20, %s21
        %s241 = smul.u32 2, %s240
        %p242 = scmp.lt.s32.totalorder %s19, 1
        %s243 = scalar_select %p242, %s19, 1
        %p244 = scmp.lt.s32.totalorder %s241, 1
        %s245 = scalar_select %p244, %s241, 1
        %s246 = smul.addr %s243, 2
        %s247 = sadd.s32 %s245, %s246
        %s248 = smul.addr %s247, 4
        %s249 = scalar_lea.vmem %s1, %s248
        %s250 = sadd.s32 %s20, %s21
        %s251 = smul.u32 2, %s250
      $region24: #{tpu_custom_call.1} parent=15 // pred_fallthru
        _
    $region16: #{tpu_custom_call.1} parent=5 // pred_fallthru
      _
    %p252 = scmp.le.s32.totalorder 1, %s12
    %p253 = scmp.lt.s32.totalorder %s12, 3
    %p254 = pnand %p252, %p253
    %p255 = pneg %p254
    // Predicated region
    $region25: #{tpu_custom_call.1} parent=5 // pred_check
      _
    $region26: #{tpu_custom_call.1} parent=5 // pred_check_branch
      %257 = sbr.rel (%p254) target = $region28
    $region27: #{tpu_custom_call.1} parent=5 // pred_region
      %s258 = ssub.s32 %s12, 1
      %s259 = sadd.s32 %s23, %s24
      %s260 = smul.u32 2, %s259
      %p261 = scmp.lt.s32.totalorder %s22, 1
      %s262 = scalar_select %p261, %s22, 1
      %p263 = scmp.lt.s32.totalorder %s260, 1
      %s264 = scalar_select %p263, %s260, 1
      %s265 = smul.addr %s262, 2
      %s266 = sadd.s32 %s264, %s265
      %s267 = smul.addr %s266, 8
      %s268 = scalar_lea.vmem %s0, %s267
      %p269 = pneg %p61
      %p270 = pneg %p58
      %s271 = sadd.s32 %s23, %s24
      %s272 = smul.u32 2, %s271
      %p273 = scmp.lt.s32.totalorder %s22, 1
      %s274 = scalar_select %p273, %s22, 1
      %p275 = scmp.lt.s32.totalorder %s272, 1
      %s276 = scalar_select %p275, %s272, 1
      %s277 = smul.addr %s274, 2
      %s278 = sadd.s32 %s276, %s277
      %s279 = smul.addr %s278, 4
      %s280 = scalar_lea.vmem %s1, %s279
      %p281 = pneg %p91
      %p282 = pneg %p88
      %p283 = pneg %p119
      %p284 = pneg %p116
      %p285 = scmp.lt.s32.totalorder %s22, 1
      %s286 = scalar_select %p285, %s22, 1
      %p287 = scmp.lt.s32.totalorder %s23, 0
      %s288 = scalar_select %p287, %s23, 0
      %s289 = sadd.s32 %s288, %s286
      %s290 = smul.addr %s289, 4
      %s291 = scalar_lea.vmem %s2, %s290
      %p292 = pneg %p147
      %p293 = pneg %p144
      %p294 = scmp.lt.s32.totalorder %s22, 1
      %s295 = scalar_select %p294, %s22, 1
      %p296 = scmp.lt.s32.totalorder %s23, 0
      %s297 = scalar_select %p296, %s23, 0
      %s298 = sadd.s32 %s297, %s295
      %s299 = smul.addr %s298, 4
      %s300 = scalar_lea.vmem %s3, %s299
      %p301 = pneg %p175
      %p302 = pneg %p172
      %p303 = scmp.lt.s32.totalorder %s22, 1
      %s304 = scalar_select %p303, %s22, 1
      %p305 = scmp.lt.s32.totalorder %s23, 0
      %s306 = scalar_select %p305, %s23, 0
      %s307 = sadd.s32 %s306, %s304
      %s308 = smul.addr %s307, 4
      %s309 = scalar_lea.vmem %s4, %s308
      %p310 = pneg %p203
      %p311 = pneg %p200
      %p312 = scmp.lt.s32.totalorder %s22, 1
      %s313 = scalar_select %p312, %s22, 1
      %p314 = scmp.lt.s32.totalorder %s23, 0
      %s315 = scalar_select %p314, %s23, 0
      %s316 = sadd.s32 %s315, %s313
      %s317 = scalar_lea.vmem %s5, %s316
      %s318 = sadd.s32 %s23, %s24
      %s319 = smul.u32 2, %s318
      %p320 = scmp.lt.s32.totalorder %s22, 1
      %s321 = scalar_select %p320, %s22, 1
      %p322 = scmp.lt.s32.totalorder %s319, 1
      %s323 = scalar_select %p322, %s319, 1
      %s324 = smul.addr %s321, 2
      %s325 = sadd.s32 %s323, %s324
      %s326 = smul.addr %s325, 8
      %s327 = scalar_lea.vmem %s0, %s326
      %s328 = sadd.s32 %s23, %s24
      %s329 = smul.u32 2, %s328
      %s330 = sadd.s32 %s23, %s24
      %s331 = smul.u32 2, %s330
      %p332 = scmp.lt.s32.totalorder %s22, 1
      %s333 = scalar_select %p332, %s22, 1
      %p334 = scmp.lt.s32.totalorder %s331, 1
      %s335 = scalar_select %p334, %s331, 1
      %s336 = smul.addr %s333, 2
      %s337 = sadd.s32 %s335, %s336
      %s338 = smul.addr %s337, 4
      %s339 = scalar_lea.vmem %s1, %s338
      %s340 = sadd.s32 %s23, %s24
      %s341 = smul.u32 2, %s340
      %p342 = scmp.lt.s32.totalorder %s22, 1
      %s343 = scalar_select %p342, %s22, 1
      %p344 = scmp.lt.s32.totalorder %s23, 0
      %s345 = scalar_select %p344, %s23, 0
      %s346 = sadd.s32 %s345, %s343
      %s347 = smul.addr %s346, 4
      %s348 = scalar_lea.vmem %s2, %s347
      %p349 = scmp.lt.s32.totalorder %s22, 1
      %s350 = scalar_select %p349, %s22, 1
      %p351 = scmp.lt.s32.totalorder %s23, 0
      %s352 = scalar_select %p351, %s23, 0
      %s353 = sadd.s32 %s352, %s350
      %s354 = smul.addr %s353, 4
      %s355 = scalar_lea.vmem %s3, %s354
      %p356 = scmp.lt.s32.totalorder %s22, 1
      %s357 = scalar_select %p356, %s22, 1
      %p358 = scmp.lt.s32.totalorder %s23, 0
      %s359 = scalar_select %p358, %s23, 0
      %s360 = sadd.s32 %s359, %s357
      %s361 = smul.addr %s360, 4
      %s362 = scalar_lea.vmem %s4, %s361
      %p363 = scmp.lt.s32.totalorder %s22, 1
      %s364 = scalar_select %p363, %s22, 1
      %p365 = scmp.lt.s32.totalorder %s23, 0
      %s366 = scalar_select %p365, %s23, 0
      %s367 = sadd.s32 %s366, %s364
      %s368 = scalar_lea.vmem %s5, %s367
      %p369 = scmp.eq.s32.totalorder %s24, 0
      // Predicated region
      $region29: #{tpu_custom_call.1} parent=27 // pred_check
        %p370 = pneg %p369
      $region30: #{tpu_custom_call.1} parent=27 // pred_check_branch
        %372 = sbr.rel (%p370) target = $region32
      $region31: #{tpu_custom_call.1} parent=27 // pred_region
        %vm373 = vcmask 3072
        %374 = vst.msk [vmem:[%s348] sm:$0xf] %vm373, 0.0
        %375 = vst.msk [vmem:[%s355] sm:$0xf] %vm373, 0.0
        %376 = vst.msk [vmem:[%s362] sm:$0xf] %vm373, 0.0
        %vm377 = vcmask 0
        %378 = vst.msk [vmem:[%s368] sm:$0x1] %vm377, 0.0
      $region32: #{tpu_custom_call.1} parent=27 // pred_fallthru
        _
      %v379 = vld [vmem:[%s327] sm:$0x1f]
      %v380 = vld [vmem:[%s327 + $0x8] sm:$0x1f]
      %v381 = vld [vmem:[%s339] sm:$0xff]
      %vm382 = vcmask 1043456
      %v383 = vsel %vm382, %v379, -inf
      %v384 = vrot.slane %v383, 4
      %v385 = vmax.f32 %v383, %v384
      %v386 = vrot.slane %v385, 2
      %v387 = vmax.f32 %v385, %v386
      %v388 = vrot.slane %v387, 1
      %v389 = vmax.f32 %v387, %v388
      %v390 = vsel %vm382, %v380, -inf
      %v391 = vrot.slane %v390, 4
      %v392 = vmax.f32 %v390, %v391
      %v393 = vrot.slane %v392, 2
      %v394 = vmax.f32 %v392, %v393
      %v395 = vrot.slane %v394, 1
      %v396 = vmax.f32 %v394, %v395
      %v397 = vsub.f32 %v379, %v389
      %v398 = vsub.f32 %v380, %v396
      %v399 = vmul.f32 %v397, 1.442695
      %v400 = vpow.pop %v399
      %v401 = vmul.f32 %v398, 1.442695
      %v402 = vpow.pop %v401
      %v403 = vsel %vm382, %v400, 0.0
      %v404 = vrot.slane %v403, 4
      %v405 = vadd.f32 %v403, %v404
      %v406 = vrot.slane %v405, 2
      %v407 = vadd.f32 %v405, %v406
      %v408 = vrot.slane %v407, 1
      %v409 = vadd.f32 %v407, %v408
      %v410 = vsel %vm382, %v402, 0.0
      %v411 = vrot.slane %v410, 4
      %v412 = vadd.f32 %v410, %v411
      %v413 = vrot.slane %v412, 2
      %v414 = vadd.f32 %v412, %v413
      %v415 = vrot.slane %v414, 1
      %v416 = vadd.f32 %v414, %v415
      %v417 = vrcp.pop %v409
      %v418 = vrcp.pop %v416
      %v419 = vmul.f32 %v400, %v417
      %v420 = vmul.f32 %v402, %v418
      %vm421 = vcmp.eq.f32.partialorder %v379, %v389
      %vm422 = vcmp.eq.f32.partialorder %v380, %v396
      %v423 = vsel %vm421, 1, 0
      %v424 = vsel %vm422, 1, 0
      %v425 = vcvt.s32.f32 %v423
      %v426 = vcvt.s32.f32 %v424
      %v429 = vcombine.low %v425, %v426
      %v431 = vmul.f32 %v381, %v429
      %v433 = vcombine.high %v431, %v431
      %v435 = vsel %vm382, %v431, 0.0
      %v436 = vrot.slane %v435, 4
      %v437 = vadd.f32 %v435, %v436
      %v438 = vrot.slane %v437, 2
      %v439 = vadd.f32 %v437, %v438
      %v440 = vrot.slane %v439, 1
      %v441 = vadd.f32 %v439, %v440
      %v442 = vsel %vm382, %v433, 0.0
      %v443 = vrot.slane %v442, 4
      %v444 = vadd.f32 %v442, %v443
      %v445 = vrot.slane %v444, 2
      %v446 = vadd.f32 %v444, %v445
      %v447 = vrot.slane %v446, 1
      %v448 = vadd.f32 %v446, %v447
      %v449 = vxor.u32 %v379, 2147483648
      %v450 = vxor.u32 %v380, 2147483648
      %v451 = vmul.f32 %v449, 1.442695
      %v452 = vpow.pop %v451
      %v453 = vmul.f32 %v450, 1.442695
      %v454 = vpow.pop %v453
      %v455 = vadd.f32 %v452, 1.0
      %v456 = vadd.f32 %v454, 1.0
      %v457 = vrcp.pop %v455
      %v458 = vmul.f32 1.0, %v457
      %v459 = vrcp.pop %v456
      %v460 = vmul.f32 1.0, %v459
      %v461 = vsub.f32 1.0, %v441
      %v462 = vsub.f32 1.0, %v448
      %v463 = vsub.f32 %v461, %v458
      %v464 = vsub.f32 %v462, %v460
      %v465 = vand.u32 2147483647, %v463
      %v466 = vand.u32 2147483647, %v464
      %v467 = vld [vmem:[%s348] sm:$0xf]
      %v469 = vcombine.high %v381, %v381
      %v471 = vmul.f32 %v419, %v381
      %v472 = vmul.f32 %v420, %v469
      %v473 = vsel %vm382, %v471, 0.0
      %v474 = vsel %vm382, %v472, 0.0
      %v475 = vadd.f32 %v473, %v474
      %476 = vadd.xlane.f32.xlu0 %v475
      %v477 = vpop.xlane.xlu0 %476
      %v478 = vadd.f32 %v467, %v477
      %vm479 = vcmask 3072
      %480 = vst.msk [vmem:[%s348] sm:$0xf] %vm479, %v478
      %v481 = vld [vmem:[%s355] sm:$0xf]
      %v482 = vsel %vm382, %v419, 0.0
      %v483 = vsel %vm382, %v420, 0.0
      %v484 = vadd.f32 %v482, %v483
      %485 = vadd.xlane.f32.xlu0 %v484
      %v486 = vpop.xlane.xlu0 %485
      %v487 = vadd.f32 %v481, %v486
      %488 = vst.msk [vmem:[%s355] sm:$0xf] %vm479, %v487
      %v489 = vld [vmem:[%s362] sm:$0xf]
      %v490 = vsel %vm382, %v381, 0.0
      %v491 = vsel %vm382, %v469, 0.0
      %v492 = vadd.f32 %v490, %v491
      %493 = vadd.xlane.f32.xlu0 %v492
      %v494 = vpop.xlane.xlu0 %493
      %v495 = vadd.f32 %v489, %v494
      %496 = vst.msk [vmem:[%s362] sm:$0xf] %vm479, %v495
      %v497 = vld [vmem:[%s368] sm:$0x1]
      %vm498 = vcmask 1044484
      %v499 = vsel %vm498, %v465, 0.0
      %v500 = vsel %vm498, %v466, 0.0
      %v501 = vadd.f32 %v499, %v500
      %502 = vadd.xlane.f32.xlu0 %v501
      %v503 = vpop.xlane.xlu0 %502
      %v505 = vlaneseq
      %v506 = vshrl.u32 %v505, 7
      %v507 = vsub.s32 4, %v506
      %v508 = vrot.slane %v503, %v507
      %v510 = vadd.f32 %v497, %v508
      %vm511 = vcmask 0
      %512 = vst.msk [vmem:[%s368] sm:$0x1] %vm511, %v510
      %p513 = scmp.lt.s32.totalorder %s22, 1
      %s514 = scalar_select %p513, %s22, 1
      %p515 = scmp.lt.s32.totalorder %s23, 0
      %s516 = scalar_select %p515, %s23, 0
      %s517 = sadd.s32 %s516, %s514
      %s518 = smul.addr %s517, 4
      %s519 = scalar_lea.vmem %s2, %s518
      %p520 = scmp.lt.s32.totalorder %s22, 1
      %s521 = scalar_select %p520, %s22, 1
      %p522 = scmp.lt.s32.totalorder %s23, 0
      %s523 = scalar_select %p522, %s23, 0
      %s524 = sadd.s32 %s523, %s521
      %s525 = smul.addr %s524, 4
      %s526 = scalar_lea.vmem %s3, %s525
      %p527 = scmp.lt.s32.totalorder %s22, 1
      %s528 = scalar_select %p527, %s22, 1
      %p529 = scmp.lt.s32.totalorder %s23, 0
      %s530 = scalar_select %p529, %s23, 0
      %s531 = sadd.s32 %s530, %s528
      %s532 = smul.addr %s531, 4
      %s533 = scalar_lea.vmem %s4, %s532
      %p534 = scmp.lt.s32.totalorder %s22, 1
      %s535 = scalar_select %p534, %s22, 1
      %p536 = scmp.lt.s32.totalorder %s23, 0
      %s537 = scalar_select %p536, %s23, 0
      %s538 = sadd.s32 %s537, %s535
      %s539 = scalar_lea.vmem %s5, %s538
      // Predicated region
      $region33: #{tpu_custom_call.1} parent=27 // pred_check
        %p540 = pneg %p116
      $region34: #{tpu_custom_call.1} parent=27 // pred_check_branch
        %542 = sbr.rel (%p540) target = $region36
      $region35: #{tpu_custom_call.1} parent=27 // pred_region
        _
      $region36: #{tpu_custom_call.1} parent=27 // pred_fallthru
        _
      // Predicated region
      $region37: #{tpu_custom_call.1} parent=27 // pred_check
        %p543 = pneg %p144
      $region38: #{tpu_custom_call.1} parent=27 // pred_check_branch
        %545 = sbr.rel (%p543) target = $region40
      $region39: #{tpu_custom_call.1} parent=27 // pred_region
        _
      $region40: #{tpu_custom_call.1} parent=27 // pred_fallthru
        _
      // Predicated region
      $region41: #{tpu_custom_call.1} parent=27 // pred_check
        %p546 = pneg %p172
      $region42: #{tpu_custom_call.1} parent=27 // pred_check_branch
        %548 = sbr.rel (%p546) target = $region44
      $region43: #{tpu_custom_call.1} parent=27 // pred_region
        _
      $region44: #{tpu_custom_call.1} parent=27 // pred_fallthru
        _
      // Predicated region
      $region45: #{tpu_custom_call.1} parent=27 // pred_check
        %p549 = pneg %p200
      $region46: #{tpu_custom_call.1} parent=27 // pred_check_branch
        %551 = sbr.rel (%p549) target = $region48
      $region47: #{tpu_custom_call.1} parent=27 // pred_region
        _
      $region48: #{tpu_custom_call.1} parent=27 // pred_fallthru
        _
    $region28: #{tpu_custom_call.1} parent=5 // pred_fallthru
      _
    %p552 = scmp.le.s32.totalorder 2, %s12
    // Predicated region
    $region49: #{tpu_custom_call.1} parent=5 // pred_check
      %p553 = pneg %p552
    $region50: #{tpu_custom_call.1} parent=5 // pred_check_branch
      %555 = sbr.rel (%p553) target = $region52
    $region51: #{tpu_custom_call.1} parent=5 // pred_region
      %s556 = ssub.s32 %s12, 2
      // Predicated region
      $region53: #{tpu_custom_call.1} parent=51 // pred_check
        %p557 = pneg %p122
      $region54: #{tpu_custom_call.1} parent=51 // pred_check_branch
        %559 = sbr.rel (%p557) target = $region56
      $region55: #{tpu_custom_call.1} parent=51 // pred_region
        %p560 = scmp.lt.s32.totalorder %s25, 1
        %s561 = scalar_select %p560, %s25, 1
        %p562 = scmp.lt.s32.totalorder %s26, 0
        %s563 = scalar_select %p562, %s26, 0
        %s564 = sadd.s32 %s563, %s561
        %s565 = smul.addr %s564, 4
        %s566 = scalar_lea.vmem %s2, %s565
      $region56: #{tpu_custom_call.1} parent=51 // pred_fallthru
        _
      // Predicated region
      $region57: #{tpu_custom_call.1} parent=51 // pred_check
        %p567 = pneg %p150
      $region58: #{tpu_custom_call.1} parent=51 // pred_check_branch
        %569 = sbr.rel (%p567) target = $region60
      $region59: #{tpu_custom_call.1} parent=51 // pred_region
        %p570 = scmp.lt.s32.totalorder %s25, 1
        %s571 = scalar_select %p570, %s25, 1
        %p572 = scmp.lt.s32.totalorder %s26, 0
        %s573 = scalar_select %p572, %s26, 0
        %s574 = sadd.s32 %s573, %s571
        %s575 = smul.addr %s574, 4
        %s576 = scalar_lea.vmem %s3, %s575
      $region60: #{tpu_custom_call.1} parent=51 // pred_fallthru
        _
      // Predicated region
      $region61: #{tpu_custom_call.1} parent=51 // pred_check
        %p577 = pneg %p178
      $region62: #{tpu_custom_call.1} parent=51 // pred_check_branch
        %579 = sbr.rel (%p577) target = $region64
      $region63: #{tpu_custom_call.1} parent=51 // pred_region
        %p580 = scmp.lt.s32.totalorder %s25, 1
        %s581 = scalar_select %p580, %s25, 1
        %p582 = scmp.lt.s32.totalorder %s26, 0
        %s583 = scalar_select %p582, %s26, 0
        %s584 = sadd.s32 %s583, %s581
        %s585 = smul.addr %s584, 4
        %s586 = scalar_lea.vmem %s4, %s585
      $region64: #{tpu_custom_call.1} parent=51 // pred_fallthru
        _
      // Predicated region
      $region65: #{tpu_custom_call.1} parent=51 // pred_check
        %p587 = pneg %p206
      $region66: #{tpu_custom_call.1} parent=51 // pred_check_branch
        %589 = sbr.rel (%p587) target = $region68
      $region67: #{tpu_custom_call.1} parent=51 // pred_region
        %p590 = scmp.lt.s32.totalorder %s25, 1
        %s591 = scalar_select %p590, %s25, 1
        %p592 = scmp.lt.s32.totalorder %s26, 0
        %s593 = scalar_select %p592, %s26, 0
        %s594 = sadd.s32 %s593, %s591
        %s595 = scalar_lea.vmem %s5, %s594
      $region68: #{tpu_custom_call.1} parent=51 // pred_fallthru
        _
    $region52: #{tpu_custom_call.1} parent=5 // pred_fallthru
      _
  $region6: #{tpu_custom_call.1} parent=0 // loop_footer
    %s16 = sadd.s32 1, %s12
  $region7: #{tpu_custom_call.1} parent=0 // loop_footer_branch
    %11 = sbr.rel target = $region3
  $region8: #{tpu_custom_call.1} parent=0 // loop_exit
    _

</llo_original>
